<compile_context>
chip_gen: v7x
topology: tpu7x:2x2x1
jax: 0.10.0
libtpu: 0.0.40
codegen_flags: <defaults>
</compile_context>

<pallas_src>
import jax
import jax.numpy as jnp
from jax import lax
from jax.experimental import pallas as pl
from jax.experimental.pallas import tpu as pltpu


def _fused_postproc_kernel(obj_logit_ref, rel_logit_ref, pair_ref,
                           obj_prob_ref, rel_prob_ref, obj_aux_ref, rel_aux_ref):
    f32 = jnp.float32
    NEG = f32(-1e30)  # large-negative mask (avoids inf-inf NaNs)

    # ---------------- object branch ----------------
    ol = obj_logit_ref[0].astype(f32)                       # [N, C]
    n, c = ol.shape
    ocol = lax.broadcasted_iota(jnp.int32, (n, c), 1)
    o_bg = ocol == (c - 1)
    ol_masked = jnp.where(o_bg, NEG, ol)                    # exclude background column
    o_mmax = jnp.max(ol_masked, axis=-1, keepdims=True)     # max over [:, :-1]
    o_mall = jnp.maximum(o_mmax, ol[:, c - 1:c])            # full-row max (stable softmax)
    o_e = jnp.exp(ol - o_mall)
    o_inv = pl.reciprocal(jnp.sum(o_e, axis=-1, keepdims=True), approx=True)
    obj_prob_ref[0] = jnp.where(o_bg, 0.0, o_e * o_inv)     # softmax with bg column zeroed

    obj_scores = jnp.exp(o_mmax - o_mall) * o_inv           # [N,1] = obj_class_prob[:, :-1].max(1)
    obj_pred = jnp.min(jnp.where(ol_masked == o_mmax, ocol, c),
                       axis=-1, keepdims=True)              # first argmax over [:, :-1]

    lane2_o = lax.broadcasted_iota(jnp.int32, (n, 2), 1)
    obj_aux_ref[0] = jnp.where(lane2_o == 0, obj_scores, obj_pred.astype(f32))

    # ---------------- relation branch ----------------
    rl = rel_logit_ref[0].astype(f32)                       # [R, Cr]
    r, cr = rl.shape
    rcol = lax.broadcasted_iota(jnp.int32, (r, cr), 1)
    r_bg = rcol == (cr - 1)
    rl_masked = jnp.where(r_bg, NEG, rl)
    r_mmax = jnp.max(rl_masked, axis=-1, keepdims=True)
    r_mall = jnp.maximum(r_mmax, rl[:, cr - 1:cr])
    r_e = jnp.exp(rl - r_mall)
    r_inv = pl.reciprocal(jnp.sum(r_e, axis=-1, keepdims=True), approx=True)
    rel_prob_ref[0] = r_e * r_inv                           # full softmax (bg NOT zeroed, per spec)

    rel_scores = jnp.exp(r_mmax - r_mall) * r_inv           # rel_class_prob[:, :-1].max(1)
    rel_class = jnp.min(jnp.where(rl_masked == r_mmax, rcol, cr),
                        axis=-1, keepdims=True)

    # obj_scores[rel_pair_idx[:, 0/1]] gather as one-hot matmuls on the MXU.
    # rel_pair_idx is a single tiny (R,2) block load; fine while num_obj ~ 16..128.
    pair = pair_ref[0]                                      # [R, 2] int32
    oid = lax.broadcasted_iota(jnp.int32, (r, n), 1)
    oh0 = (oid == pair[:, 0:1]).astype(f32)                 # [R, N]
    oh1 = (oid == pair[:, 1:2]).astype(f32)
    s0 = jnp.dot(oh0, obj_scores, preferred_element_type=f32)   # [R, 1]
    s1 = jnp.dot(oh1, obj_scores, preferred_element_type=f32)
    triple = rel_scores * s0 * s1                           # triple_scores

    lane2_r = lax.broadcasted_iota(jnp.int32, (r, 2), 1)
    rel_aux_ref[0] = jnp.where(lane2_r == 0, triple, rel_class.astype(f32))


@jax.jit
def _forward_batched(obj_logits, rel_logits, rel_pairs):
    B, N, C = obj_logits.shape
    _, R, Cr = rel_logits.shape

    # TODO(synk): at realistic SGG sizes (R in the thousands, 51/151 classes) pad the
    # class axis to 128 and tile R with an extra (parallel) grid axis; unnecessary here.
    obj_prob, rel_prob, obj_aux, rel_aux = pl.pallas_call(
        _fused_postproc_kernel,
        grid=(B,),
        in_specs=[
            pl.BlockSpec((1, N, C), lambda b: (b, 0, 0)),
            pl.BlockSpec((1, R, Cr), lambda b: (b, 0, 0)),
            pl.BlockSpec((1, R, 2), lambda b: (b, 0, 0)),
        ],
        out_specs=[
            pl.BlockSpec((1, N, C), lambda b: (b, 0, 0)),
            pl.BlockSpec((1, R, Cr), lambda b: (b, 0, 0)),
            pl.BlockSpec((1, N, 2), lambda b: (b, 0, 0)),
            pl.BlockSpec((1, R, 2), lambda b: (b, 0, 0)),
        ],
        out_shape=[
            jax.ShapeDtypeStruct((B, N, C), jnp.float32),   # obj_class_prob
            jax.ShapeDtypeStruct((B, R, Cr), jnp.float32),  # rel_class_prob
            jax.ShapeDtypeStruct((B, N, 2), jnp.float32),   # packed [obj_scores, obj_pred]
            jax.ShapeDtypeStruct((B, R, 2), jnp.float32),   # packed [triple_scores, rel_class]
        ],
        compiler_params=pltpu.CompilerParams(
            dimension_semantics=("parallel",)),
    )(obj_logits, rel_logits, rel_pairs)

    obj_scores = obj_aux[..., 0]                            # (B, N)
    obj_pred = obj_aux[..., 1].astype(jnp.int32)            # (B, N)
    triple = rel_aux[..., 0]                                # (B, R)
    rel_labels = rel_aux[..., 1].astype(jnp.int32)          # (B, R)

    # torch.sort(triple_scores, descending=True): fused XLA glue in the same executable.
    order = jnp.argsort(-triple, axis=-1)                   # (B, R)
    pairs_sorted = jnp.take_along_axis(rel_pairs, order[..., None], axis=1)
    rel_prob_sorted = jnp.take_along_axis(rel_prob, order[..., None], axis=1)
    labels_sorted = jnp.take_along_axis(rel_labels, order, axis=1)

    return obj_prob, obj_scores, obj_pred, pairs_sorted, rel_prob_sorted, labels_sorted


def post_processor_with_grammar_forward(relation_logits, refine_logits,
                                        rel_pair_idxs, boxes, img_sizes):
    """Mirrors PostProcessorWithGrammar.forward with use_gt_box=True,
    argmax_over_all_logits_and_filter_afterwards=False,
    use_advanced_grammar_postprocessing=False."""
    # TODO(synk): obj_prediction_nms (use_gt_box=False branch) has no clean Pallas
    #             equivalent (per-class NMS over boxes_per_cls); only the GT-box branch
    #             is implemented.
    # TODO(synk): advanced grammar postprocessing calls an external library; skipped
    #             (flag=False in this configuration).
    # TODO(synk): images with differing num_obj / num_rel must be padded to common sizes
    #             before stacking; the demo (and typical batched eval) is uniform.
    assert all(o.shape == refine_logits[0].shape for o in refine_logits)
    assert all(r.shape == relation_logits[0].shape for r in relation_logits)
    assert all(p.shape == rel_pair_idxs[0].shape for p in rel_pair_idxs)

    obj_logits = jnp.stack([jnp.asarray(o, jnp.float32) for o in refine_logits])
    rel_logits = jnp.stack([jnp.asarray(r, jnp.float32) for r in relation_logits])
    rel_pairs = jnp.stack([jnp.asarray(p, jnp.int32) for p in rel_pair_idxs])

    (obj_prob, obj_scores, obj_pred,
     pairs_sorted, rel_prob_sorted, labels_sorted) = _forward_batched(
        obj_logits, rel_logits, rel_pairs)

    results = []
    for i, (box, img_size) in enumerate(zip(boxes, img_sizes)):
        results.append({
            "image_size": img_size,
            "pred_boxes": box,                     # use_gt_box=True -> reference boxes
            "pred_classes": obj_pred[i],
            "scores": obj_scores[i],
            "pred_class_prob": obj_prob[i],
            "_rel_pair_idxs": pairs_sorted[i],
            "_pred_rel_scores": rel_prob_sorted[i],
            "_pred_rel_labels": labels_sorted[i],
        })
    return results


if __name__ == "__main__":
    key = jax.random.PRNGKey(0)
    num_images = 2
    num_obj, num_obj_cls = 16, 32      # 16 GT boxes, 32 object classes (last = background)
    num_rel, num_rel_cls = 24, 16      # 24 relation pairs, 16 predicate classes (last = bg)

    relation_logits, refine_logits, rel_pair_idxs, boxes, img_sizes = [], [], [], [], []
    for i in range(num_images):
        ki = jax.random.fold_in(key, i)
        ka, kb, kc, kd = jax.random.split(ki, 4)
        refine_logits.append(jax.random.normal(ka, (num_obj, num_obj_cls), jnp.float32))
        relation_logits.append(jax.random.normal(kb, (num_rel, num_rel_cls), jnp.float32))
        rel_pair_idxs.append(jax.random.randint(kc, (num_rel, 2), 0, num_obj, jnp.int32))
        boxes.append(jax.random.uniform(kd, (num_obj, 4), jnp.float32) * 100.0)
        img_sizes.append((128, 128))

    results = post_processor_with_grammar_forward(
        relation_logits, refine_logits, rel_pair_idxs, boxes, img_sizes)

    for r in results:
        jax.block_until_ready(r["scores"])
        jax.block_until_ready(r["pred_classes"])
        jax.block_until_ready(r["pred_class_prob"])
        jax.block_until_ready(r["_pred_rel_scores"])
        jax.block_until_ready(r["_pred_rel_labels"])
        jax.block_until_ready(r["_rel_pair_idxs"])

    # Lightweight, order-independent sanity check of the object branch against pure JAX
    # (tolerance is generous to accommodate the approximate EUP reciprocal).
    for i, r in enumerate(results):
        ref_prob = jax.nn.softmax(refine_logits[i], axis=-1)
        ref_prob = ref_prob.at[:, -1].set(0.0)
        ref_scores = ref_prob[:, :-1].max(axis=1)
        ref_pred = jnp.argmax(ref_prob[:, :-1], axis=1)
        assert jnp.allclose(r["pred_class_prob"], ref_prob, atol=5e-3, rtol=5e-3)
        assert jnp.allclose(r["scores"], ref_scores, atol=5e-3, rtol=5e-3)
        assert bool(jnp.all(r["pred_classes"] == ref_pred.astype(jnp.int32)))

    print("KERNEL_OK")
</pallas_src>

<mosaic_0001>
module attributes {stable_mosaic.version = 11 : i64} {
  func.func @_fused_postproc_kernel(%arg0: i32, %arg1: memref<1x16x32xf32, #tpu.memory_space<vmem>>, %arg2: memref<1x24x16xf32, #tpu.memory_space<vmem>>, %arg3: memref<1x24x2xi32, #tpu.memory_space<vmem>>, %arg4: memref<1x16x32xf32, #tpu.memory_space<vmem>>, %arg5: memref<1x24x16xf32, #tpu.memory_space<vmem>>, %arg6: memref<1x16x2xf32, #tpu.memory_space<vmem>>, %arg7: memref<1x24x2xf32, #tpu.memory_space<vmem>>) attributes {dimension_semantics = [#tpu.dimension_semantics<parallel>], iteration_bounds = array<i64: 2>, scalar_prefetch = 0 : i64, scratch_operands = 0 : i64, tpu.core_type = #tpu.core_type<tc>, window_params = [{transform_indices = @transform_0, window_bounds = array<i64: 1, 16, 32>}, {transform_indices = @transform_1, window_bounds = array<i64: 1, 24, 16>}, {transform_indices = @transform_2, window_bounds = array<i64: 1, 24, 2>}, {transform_indices = @transform_3, window_bounds = array<i64: 1, 16, 32>}, {transform_indices = @transform_4, window_bounds = array<i64: 1, 24, 16>}, {transform_indices = @transform_5, window_bounds = array<i64: 1, 16, 2>}, {transform_indices = @transform_6, window_bounds = array<i64: 1, 24, 2>}]} {
    %c0 = arith.constant 0 : index
    %c0_0 = arith.constant 0 : index
    %c0_1 = arith.constant 0 : index
    %0 = vector.load %arg1[%c0, %c0_0, %c0_1] : memref<1x16x32xf32, #tpu.memory_space<vmem>>, vector<1x16x32xf32>
    %1 = vector.shape_cast %0 : vector<1x16x32xf32> to vector<16x32xf32>
    %2 = tpu.iota {dimensions = array<i32: 1>} : vector<16x32xi32>
    %c31_i32 = arith.constant 31 : i32
    %3 = vector.broadcast %c31_i32 : i32 to vector<16x32xi32>
    %4 = arith.cmpi eq, %2, %3 : vector<16x32xi32>
    %cst = arith.constant -1.000000e+30 : f32
    %5 = vector.broadcast %cst : f32 to vector<16x32xf32>
    %6 = arith.select %4, %5, %1 : vector<16x32xi1>, vector<16x32xf32>
    %cst_2 = arith.constant dense<0xFF800000> : vector<16xf32>
    %7 = vector.multi_reduction <maximumf>, %6, %cst_2 [1] : vector<16x32xf32> to vector<16xf32>
    %8 = vector.shape_cast %7 : vector<16xf32> to vector<16x1xf32>
    %9 = vector.extract_strided_slice %1 {offsets = [0, 31], sizes = [16, 1], strides = [1, 1]} : vector<16x32xf32> to vector<16x1xf32>
    %10 = arith.maximumf %8, %9 : vector<16x1xf32>
    %11 = vector.broadcast %10 : vector<16x1xf32> to vector<16x32xf32>
    %12 = arith.subf %1, %11 : vector<16x32xf32>
    %13 = math.exp %12 : vector<16x32xf32>
    %cst_3 = arith.constant dense<0.000000e+00> : vector<16xf32>
    %14 = vector.multi_reduction <add>, %13, %cst_3 [1] : vector<16x32xf32> to vector<16xf32>
    %15 = vector.shape_cast %14 : vector<16xf32> to vector<16x1xf32>
    %16 = tpu.reciprocal %15 {approx = true} : vector<16x1xf32> -> vector<16x1xf32>
    %17 = vector.broadcast %16 : vector<16x1xf32> to vector<16x32xf32>
    %18 = arith.mulf %13, %17 : vector<16x32xf32>
    %cst_4 = arith.constant 0.000000e+00 : f32
    %19 = vector.broadcast %cst_4 : f32 to vector<16x32xf32>
    %20 = arith.select %4, %19, %18 : vector<16x32xi1>, vector<16x32xf32>
    %c0_5 = arith.constant 0 : index
    %c0_6 = arith.constant 0 : index
    %c0_7 = arith.constant 0 : index
    %21 = vector.load %arg4[%c0_5, %c0_6, %c0_7] : memref<1x16x32xf32, #tpu.memory_space<vmem>>, vector<1x16x32xf32>
    %22 = vector.shape_cast %21 : vector<1x16x32xf32> to vector<16x32xf32>
    %23 = vector.shape_cast %20 : vector<16x32xf32> to vector<1x16x32xf32>
    tpu.vector_store %arg4[%c0_5, %c0_6, %c0_7], %23 {strides = array<i32>} : memref<1x16x32xf32, #tpu.memory_space<vmem>>, vector<1x16x32xf32>,
    %24 = arith.subf %8, %10 : vector<16x1xf32>
    %25 = math.exp %24 : vector<16x1xf32>
    %26 = arith.mulf %25, %16 : vector<16x1xf32>
    %27 = vector.broadcast %8 : vector<16x1xf32> to vector<16x32xf32>
    %28 = arith.cmpf oeq, %6, %27 : vector<16x32xf32>
    %c32_i32 = arith.constant 32 : i32
    %29 = vector.broadcast %c32_i32 : i32 to vector<16x32xi32>
    %30 = arith.select %28, %2, %29 : vector<16x32xi1>, vector<16x32xi32>
    %cst_8 = arith.constant dense<2147483647> : vector<16xi32>
    %31 = vector.multi_reduction <minsi>, %30, %cst_8 [1] : vector<16x32xi32> to vector<16xi32>
    %32 = vector.shape_cast %31 : vector<16xi32> to vector<16x1xi32>
    %33 = tpu.iota {dimensions = array<i32: 1>} : vector<16x2xi32>
    %c0_i32 = arith.constant 0 : i32
    %34 = vector.broadcast %c0_i32 : i32 to vector<16x2xi32>
    %35 = arith.cmpi eq, %33, %34 : vector<16x2xi32>
    %36 = arith.sitofp %32 : vector<16x1xi32> to vector<16x1xf32>
    %37 = vector.shape_cast %26 : vector<16x1xf32> to vector<16x1xf32>
    %38 = vector.broadcast %37 : vector<16x1xf32> to vector<16x2xf32>
    %39 = vector.shape_cast %36 : vector<16x1xf32> to vector<16x1xf32>
    %40 = vector.broadcast %39 : vector<16x1xf32> to vector<16x2xf32>
    %41 = arith.select %35, %38, %40 : vector<16x2xi1>, vector<16x2xf32>
    %c0_9 = arith.constant 0 : index
    %c0_10 = arith.constant 0 : index
    %c0_11 = arith.constant 0 : index
    %42 = vector.load %arg6[%c0_9, %c0_10, %c0_11] : memref<1x16x2xf32, #tpu.memory_space<vmem>>, vector<1x16x2xf32>
    %43 = vector.shape_cast %42 : vector<1x16x2xf32> to vector<16x2xf32>
    %44 = vector.shape_cast %41 : vector<16x2xf32> to vector<1x16x2xf32>
    tpu.vector_store %arg6[%c0_9, %c0_10, %c0_11], %44 {strides = array<i32>} : memref<1x16x2xf32, #tpu.memory_space<vmem>>, vector<1x16x2xf32>,
    %c0_12 = arith.constant 0 : index
    %c0_13 = arith.constant 0 : index
    %c0_14 = arith.constant 0 : index
    %45 = vector.load %arg2[%c0_12, %c0_13, %c0_14] : memref<1x24x16xf32, #tpu.memory_space<vmem>>, vector<1x24x16xf32>
    %46 = vector.shape_cast %45 : vector<1x24x16xf32> to vector<24x16xf32>
    %47 = tpu.iota {dimensions = array<i32: 1>} : vector<24x16xi32>
    %c15_i32 = arith.constant 15 : i32
    %48 = vector.broadcast %c15_i32 : i32 to vector<24x16xi32>
    %49 = arith.cmpi eq, %47, %48 : vector<24x16xi32>
    %cst_15 = arith.constant -1.000000e+30 : f32
    %50 = vector.broadcast %cst_15 : f32 to vector<24x16xf32>
    %51 = arith.select %49, %50, %46 : vector<24x16xi1>, vector<24x16xf32>
    %cst_16 = arith.constant dense<0xFF800000> : vector<24xf32>
    %52 = vector.multi_reduction <maximumf>, %51, %cst_16 [1] : vector<24x16xf32> to vector<24xf32>
    %53 = vector.shape_cast %52 : vector<24xf32> to vector<24x1xf32>
    %54 = vector.extract_strided_slice %46 {offsets = [0, 15], sizes = [24, 1], strides = [1, 1]} : vector<24x16xf32> to vector<24x1xf32>
    %55 = arith.maximumf %53, %54 : vector<24x1xf32>
    %56 = vector.broadcast %55 : vector<24x1xf32> to vector<24x16xf32>
    %57 = arith.subf %46, %56 : vector<24x16xf32>
    %58 = math.exp %57 : vector<24x16xf32>
    %cst_17 = arith.constant dense<0.000000e+00> : vector<24xf32>
    %59 = vector.multi_reduction <add>, %58, %cst_17 [1] : vector<24x16xf32> to vector<24xf32>
    %60 = vector.shape_cast %59 : vector<24xf32> to vector<24x1xf32>
    %61 = tpu.reciprocal %60 {approx = true} : vector<24x1xf32> -> vector<24x1xf32>
    %62 = vector.broadcast %61 : vector<24x1xf32> to vector<24x16xf32>
    %63 = arith.mulf %58, %62 : vector<24x16xf32>
    %c0_18 = arith.constant 0 : index
    %c0_19 = arith.constant 0 : index
    %c0_20 = arith.constant 0 : index
    %64 = vector.load %arg5[%c0_18, %c0_19, %c0_20] : memref<1x24x16xf32, #tpu.memory_space<vmem>>, vector<1x24x16xf32>
    %65 = vector.shape_cast %64 : vector<1x24x16xf32> to vector<24x16xf32>
    %66 = vector.shape_cast %63 : vector<24x16xf32> to vector<1x24x16xf32>
    tpu.vector_store %arg5[%c0_18, %c0_19, %c0_20], %66 {strides = array<i32>} : memref<1x24x16xf32, #tpu.memory_space<vmem>>, vector<1x24x16xf32>,
    %67 = arith.subf %53, %55 : vector<24x1xf32>
    %68 = math.exp %67 : vector<24x1xf32>
    %69 = arith.mulf %68, %61 : vector<24x1xf32>
    %70 = vector.broadcast %53 : vector<24x1xf32> to vector<24x16xf32>
    %71 = arith.cmpf oeq, %51, %70 : vector<24x16xf32>
    %c16_i32 = arith.constant 16 : i32
    %72 = vector.broadcast %c16_i32 : i32 to vector<24x16xi32>
    %73 = arith.select %71, %47, %72 : vector<24x16xi1>, vector<24x16xi32>
    %cst_21 = arith.constant dense<2147483647> : vector<24xi32>
    %74 = vector.multi_reduction <minsi>, %73, %cst_21 [1] : vector<24x16xi32> to vector<24xi32>
    %75 = vector.shape_cast %74 : vector<24xi32> to vector<24x1xi32>
    %c0_22 = arith.constant 0 : index
    %c0_23 = arith.constant 0 : index
    %c0_24 = arith.constant 0 : index
    %76 = vector.load %arg3[%c0_22, %c0_23, %c0_24] : memref<1x24x2xi32, #tpu.memory_space<vmem>>, vector<1x24x2xi32>
    %77 = vector.shape_cast %76 : vector<1x24x2xi32> to vector<24x2xi32>
    %78 = tpu.iota {dimensions = array<i32: 1>} : vector<24x16xi32>
    %79 = vector.extract_strided_slice %77 {offsets = [0, 0], sizes = [24, 1], strides = [1, 1]} : vector<24x2xi32> to vector<24x1xi32>
    %80 = vector.broadcast %79 : vector<24x1xi32> to vector<24x16xi32>
    %81 = arith.cmpi eq, %78, %80 : vector<24x16xi32>
    %82 = arith.extui %81 : vector<24x16xi1> to vector<24x16xi32>
    %83 = arith.sitofp %82 : vector<24x16xi32> to vector<24x16xf32>
    %84 = vector.extract_strided_slice %77 {offsets = [0, 1], sizes = [24, 1], strides = [1, 1]} : vector<24x2xi32> to vector<24x1xi32>
    %85 = vector.broadcast %84 : vector<24x1xi32> to vector<24x16xi32>
    %86 = arith.cmpi eq, %78, %85 : vector<24x16xi32>
    %87 = arith.extui %86 : vector<24x16xi1> to vector<24x16xi32>
    %88 = arith.sitofp %87 : vector<24x16xi32> to vector<24x16xf32>
    %cst_25 = arith.constant dense<0.000000e+00> : vector<24x1xf32>
    %89 = tpu.matmul %83, %26, %cst_25 {dimension_numbers = #tpu.dot_dimension_numbers<[1], [0], [0], [1], [0, 0, 1, 1], [], []>} : vector<24x16xf32>, vector<16x1xf32>, vector<24x1xf32> -> vector<24x1xf32>
    %cst_26 = arith.constant dense<0.000000e+00> : vector<24x1xf32>
    %90 = tpu.matmul %88, %26, %cst_26 {dimension_numbers = #tpu.dot_dimension_numbers<[1], [0], [0], [1], [0, 0, 1, 1], [], []>} : vector<24x16xf32>, vector<16x1xf32>, vector<24x1xf32> -> vector<24x1xf32>
    %91 = arith.mulf %69, %89 : vector<24x1xf32>
    %92 = arith.mulf %91, %90 : vector<24x1xf32>
    %93 = tpu.iota {dimensions = array<i32: 1>} : vector<24x2xi32>
    %c0_i32_27 = arith.constant 0 : i32
    %94 = vector.broadcast %c0_i32_27 : i32 to vector<24x2xi32>
    %95 = arith.cmpi eq, %93, %94 : vector<24x2xi32>
    %96 = arith.sitofp %75 : vector<24x1xi32> to vector<24x1xf32>
    %97 = vector.shape_cast %92 : vector<24x1xf32> to vector<24x1xf32>
    %98 = vector.broadcast %97 : vector<24x1xf32> to vector<24x2xf32>
    %99 = vector.shape_cast %96 : vector<24x1xf32> to vector<24x1xf32>
    %100 = vector.broadcast %99 : vector<24x1xf32> to vector<24x2xf32>
    %101 = arith.select %95, %98, %100 : vector<24x2xi1>, vector<24x2xf32>
    %c0_28 = arith.constant 0 : index
    %c0_29 = arith.constant 0 : index
    %c0_30 = arith.constant 0 : index
    %102 = vector.load %arg7[%c0_28, %c0_29, %c0_30] : memref<1x24x2xf32, #tpu.memory_space<vmem>>, vector<1x24x2xf32>
    %103 = vector.shape_cast %102 : vector<1x24x2xf32> to vector<24x2xf32>
    %104 = vector.shape_cast %101 : vector<24x2xf32> to vector<1x24x2xf32>
    tpu.vector_store %arg7[%c0_28, %c0_29, %c0_30], %104 {strides = array<i32>} : memref<1x24x2xf32, #tpu.memory_space<vmem>>, vector<1x24x2xf32>,
    return
  }
  func.func @transform_0(%arg0: i32) -> (i32, i32, i32) {
    %c0_i32 = arith.constant 0 : i32
    %c0_i32_0 = arith.constant 0 : i32
    %c0_i32_1 = arith.constant 0 : i32
    return %arg0, %c0_i32, %c0_i32_0 : i32, i32, i32
  }
  func.func @transform_1(%arg0: i32) -> (i32, i32, i32) {
    %c0_i32 = arith.constant 0 : i32
    %c0_i32_0 = arith.constant 0 : i32
    %c0_i32_1 = arith.constant 0 : i32
    return %arg0, %c0_i32, %c0_i32_0 : i32, i32, i32
  }
  func.func @transform_2(%arg0: i32) -> (i32, i32, i32) {
    %c0_i32 = arith.constant 0 : i32
    %c0_i32_0 = arith.constant 0 : i32
    %c0_i32_1 = arith.constant 0 : i32
    return %arg0, %c0_i32, %c0_i32_0 : i32, i32, i32
  }
  func.func @transform_3(%arg0: i32) -> (i32, i32, i32) {
    %c0_i32 = arith.constant 0 : i32
    %c0_i32_0 = arith.constant 0 : i32
    %c0_i32_1 = arith.constant 0 : i32
    return %arg0, %c0_i32, %c0_i32_0 : i32, i32, i32
  }
  func.func @transform_4(%arg0: i32) -> (i32, i32, i32) {
    %c0_i32 = arith.constant 0 : i32
    %c0_i32_0 = arith.constant 0 : i32
    %c0_i32_1 = arith.constant 0 : i32
    return %arg0, %c0_i32, %c0_i32_0 : i32, i32, i32
  }
  func.func @transform_5(%arg0: i32) -> (i32, i32, i32) {
    %c0_i32 = arith.constant 0 : i32
    %c0_i32_0 = arith.constant 0 : i32
    %c0_i32_1 = arith.constant 0 : i32
    return %arg0, %c0_i32, %c0_i32_0 : i32, i32, i32
  }
  func.func @transform_6(%arg0: i32) -> (i32, i32, i32) {
    %c0_i32 = arith.constant 0 : i32
    %c0_i32_0 = arith.constant 0 : i32
    %c0_i32_1 = arith.constant 0 : i32
    return %arg0, %c0_i32, %c0_i32_0 : i32, i32, i32
  }
}

</mosaic_0001>

<llo_original>
// kernel: _forward_batched.1
$region0: #{_forward_batched.1}
  #allocation0 [shape = 'u32[]', space=smem, size = 0x4, offset = 0x4, fixed_abs, tag = 'smem constant byte address 0x4 - core index']
  #allocation1 [shape = 'u32[144,128]{1,0:T(1,128)}', space=vmem, size = 0x12000, scoped, tag = 'internal scratch']
  %s0 = inlined_call_operand.vmem [shape: f32[2,16,32], index: 0, kind: input, shape index: {}]
  %s1 = inlined_call_operand.vmem [shape: f32[2,24,16], index: 1, kind: input, shape index: {}]
  %s2 = inlined_call_operand.vmem [shape: s32[2,24,2], index: 2, kind: input, shape index: {}]
  %s3 = inlined_call_operand.hbm [shape: f32[2,16,32], index: 3, kind: output, shape index: {0}]
  %s4 = inlined_call_operand.vmem [shape: f32[2,24,16], index: 4, kind: output, shape index: {1}]
  %s5 = inlined_call_operand.vmem [shape: f32[2,16,2], index: 5, kind: output, shape index: {2}]
  %s6 = inlined_call_operand.vmem [shape: f32[2,24,2], index: 6, kind: output, shape index: {3}]
  %7 = xla_tuple %s3, %s4, %s5, %s6
  %s8 = sld [smem:[#allocation0]]
  $region69: #{_forward_batched.1} parent=0
    _
  %s10 = ssub.s32 1, %s8
  %s11 = scalar_select 0, %s10, %s8
  $region1: #{_forward_batched.1} parent=0
    #allocation2 [shape = 'u8[16384]{0}', space=vmem, size = 0x4000, scoped, tag = 'output window, operand 0']
    #allocation3 [shape = 's32[2]{0}', space=sflag, size = 0x8, scoped, tag = 'scoped memory for _forward_batched.1']
    %12 = vsyncpa [#allocation3], 0
    %s13 = scalar_lea.sflag [#allocation3], 1
    %14 = vsyncpa %s13, 0
    loop: start=0, step=1, limit=4
    $region2: #{_forward_batched.1} parent=1 // loop_pre_header
      _
    $region3: #{_forward_batched.1} parent=1 // loop_header
      %s16 = sphi 0, %s20
      %p17 = scmp.ge.s32.totalorder %s16, 4
      %s26 = sphi 0, %s28
      %s29 = sphi 0, %s26
      %s30 = sphi 0, %s29
      %s46 = sphi 0, %s30
      %s52 = sphi 0, %s54
      %s55 = sphi 0, %s52
      %s56 = sphi 0, %s55
      %s72 = sphi 0, %s56
      %s78 = sphi 0, %s80
      %s81 = sphi 0, %s78
      %s82 = sphi 0, %s81
      %s98 = sphi 0, %s82
      %s104 = sphi 0, %s106
      %s107 = sphi 0, %s104
      %s108 = sphi 0, %s107
      %s124 = sphi 0, %s108
      %s130 = sphi 0, %s132
      %s133 = sphi 0, %s130
      %s134 = sphi 0, %s133
      %s150 = sphi 0, %s134
      %s156 = sphi 0, %s158
      %s159 = sphi 0, %s156
      %s160 = sphi 0, %s159
      %s176 = sphi 0, %s160
      %s182 = sphi 0, %s184
      %s185 = sphi 0, %s182
      %s186 = sphi 0, %s185
      %s202 = sphi 0, %s186
    $region4: #{_forward_batched.1} parent=1 // loop_header_branch
      %19 = sbr.rel (%p17) target = $region8
    $region5: #{_forward_batched.1} parent=1 // loop_body
      %s21 = ssub.s32 %s16, 1
      %s22 = ssub.s32 %s16, 2
      %s23 = sadd.s32 %s16, 1
      %s24 = ssub.s32 %s16, %s23
      %p25 = scmp.eq.s32.totalorder %s24, 0
      %s27 = sadd.s32 %s26, 1
      %s28 = scalar_select %p25, %s26, %s27
      %p31 = pneg %p25
      %p32 = scmp.eq.s32.totalorder %s16, 1
      %p33 = por %p31, %p32
      %p34 = scmp.ne.s32.totalorder %s26, %s29
      %p35 = scmp.eq.s32.totalorder %s16, 0
      %p36 = por %p34, %p35
      %p37 = scmp.ne.s32.totalorder %s26, %s29
      %p38 = scmp.eq.s32.totalorder %s21, 1
      %p39 = por %p37, %p38
      %p40 = scmp.ne.s32.totalorder %s29, %s30
      %p41 = scmp.eq.s32.totalorder %s21, 0
      %p42 = por %p40, %p41
      %p43 = scmp.ne.s32.totalorder %s29, %s30
      %p44 = scmp.eq.s32.totalorder %s22, 1
      %p45 = por %p43, %p44
      %p47 = scmp.ne.s32.totalorder %s30, %s46
      %p48 = scmp.eq.s32.totalorder %s22, 0
      %p49 = por %p47, %p48
      %s50 = ssub.s32 %s16, %s23
      %p51 = scmp.eq.s32.totalorder %s50, 0
      %s53 = sadd.s32 %s52, 1
      %s54 = scalar_select %p51, %s52, %s53
      %p57 = pneg %p51
      %p58 = scmp.eq.s32.totalorder %s16, 1
      %p59 = por %p57, %p58
      %p60 = scmp.ne.s32.totalorder %s52, %s55
      %p61 = scmp.eq.s32.totalorder %s16, 0
      %p62 = por %p60, %p61
      %p63 = scmp.ne.s32.totalorder %s52, %s55
      %p64 = scmp.eq.s32.totalorder %s21, 1
      %p65 = por %p63, %p64
      %p66 = scmp.ne.s32.totalorder %s55, %s56
      %p67 = scmp.eq.s32.totalorder %s21, 0
      %p68 = por %p66, %p67
      %p69 = scmp.ne.s32.totalorder %s55, %s56
      %p70 = scmp.eq.s32.totalorder %s22, 1
      %p71 = por %p69, %p70
      %p73 = scmp.ne.s32.totalorder %s56, %s72
      %p74 = scmp.eq.s32.totalorder %s22, 0
      %p75 = por %p73, %p74
      %s76 = ssub.s32 %s16, %s23
      %p77 = scmp.eq.s32.totalorder %s76, 0
      %s79 = sadd.s32 %s78, 1
      %s80 = scalar_select %p77, %s78, %s79
      %p83 = pneg %p77
      %p84 = scmp.eq.s32.totalorder %s16, 1
      %p85 = por %p83, %p84
      %p86 = scmp.ne.s32.totalorder %s78, %s81
      %p87 = scmp.eq.s32.totalorder %s16, 0
      %p88 = por %p86, %p87
      %p89 = scmp.ne.s32.totalorder %s78, %s81
      %p90 = scmp.eq.s32.totalorder %s21, 1
      %p91 = por %p89, %p90
      %p92 = scmp.ne.s32.totalorder %s81, %s82
      %p93 = scmp.eq.s32.totalorder %s21, 0
      %p94 = por %p92, %p93
      %p95 = scmp.ne.s32.totalorder %s81, %s82
      %p96 = scmp.eq.s32.totalorder %s22, 1
      %p97 = por %p95, %p96
      %p99 = scmp.ne.s32.totalorder %s82, %s98
      %p100 = scmp.eq.s32.totalorder %s22, 0
      %p101 = por %p99, %p100
      %s102 = ssub.s32 %s16, %s23
      %p103 = scmp.eq.s32.totalorder %s102, 0
      %s105 = sadd.s32 %s104, 1
      %s106 = scalar_select %p103, %s104, %s105
      %p109 = pneg %p103
      %p110 = scmp.eq.s32.totalorder %s16, 1
      %p111 = por %p109, %p110
      %p112 = scmp.ne.s32.totalorder %s104, %s107
      %p113 = scmp.eq.s32.totalorder %s16, 0
      %p114 = por %p112, %p113
      %p115 = scmp.ne.s32.totalorder %s104, %s107
      %p116 = scmp.eq.s32.totalorder %s21, 1
      %p117 = por %p115, %p116
      %p118 = scmp.ne.s32.totalorder %s107, %s108
      %p119 = scmp.eq.s32.totalorder %s21, 0
      %p120 = por %p118, %p119
      %p121 = scmp.ne.s32.totalorder %s107, %s108
      %p122 = scmp.eq.s32.totalorder %s22, 1
      %p123 = por %p121, %p122
      %p125 = scmp.ne.s32.totalorder %s108, %s124
      %p126 = scmp.eq.s32.totalorder %s22, 0
      %p127 = por %p125, %p126
      %s128 = ssub.s32 %s16, %s23
      %p129 = scmp.eq.s32.totalorder %s128, 0
      %s131 = sadd.s32 %s130, 1
      %s132 = scalar_select %p129, %s130, %s131
      %p135 = pneg %p129
      %p136 = scmp.eq.s32.totalorder %s16, 1
      %p137 = por %p135, %p136
      %p138 = scmp.ne.s32.totalorder %s130, %s133
      %p139 = scmp.eq.s32.totalorder %s16, 0
      %p140 = por %p138, %p139
      %p141 = scmp.ne.s32.totalorder %s130, %s133
      %p142 = scmp.eq.s32.totalorder %s21, 1
      %p143 = por %p141, %p142
      %p144 = scmp.ne.s32.totalorder %s133, %s134
      %p145 = scmp.eq.s32.totalorder %s21, 0
      %p146 = por %p144, %p145
      %p147 = scmp.ne.s32.totalorder %s133, %s134
      %p148 = scmp.eq.s32.totalorder %s22, 1
      %p149 = por %p147, %p148
      %p151 = scmp.ne.s32.totalorder %s134, %s150
      %p152 = scmp.eq.s32.totalorder %s22, 0
      %p153 = por %p151, %p152
      %s154 = ssub.s32 %s16, %s23
      %p155 = scmp.eq.s32.totalorder %s154, 0
      %s157 = sadd.s32 %s156, 1
      %s158 = scalar_select %p155, %s156, %s157
      %p161 = pneg %p155
      %p162 = scmp.eq.s32.totalorder %s16, 1
      %p163 = por %p161, %p162
      %p164 = scmp.ne.s32.totalorder %s156, %s159
      %p165 = scmp.eq.s32.totalorder %s16, 0
      %p166 = por %p164, %p165
      %p167 = scmp.ne.s32.totalorder %s156, %s159
      %p168 = scmp.eq.s32.totalorder %s21, 1
      %p169 = por %p167, %p168
      %p170 = scmp.ne.s32.totalorder %s159, %s160
      %p171 = scmp.eq.s32.totalorder %s21, 0
      %p172 = por %p170, %p171
      %p173 = scmp.ne.s32.totalorder %s159, %s160
      %p174 = scmp.eq.s32.totalorder %s22, 1
      %p175 = por %p173, %p174
      %p177 = scmp.ne.s32.totalorder %s160, %s176
      %p178 = scmp.eq.s32.totalorder %s22, 0
      %p179 = por %p177, %p178
      %s180 = ssub.s32 %s16, %s23
      %p181 = scmp.eq.s32.totalorder %s180, 0
      %s183 = sadd.s32 %s182, 1
      %s184 = scalar_select %p181, %s182, %s183
      %p187 = pneg %p181
      %p188 = scmp.eq.s32.totalorder %s16, 1
      %p189 = por %p187, %p188
      %p190 = scmp.ne.s32.totalorder %s182, %s185
      %p191 = scmp.eq.s32.totalorder %s16, 0
      %p192 = por %p190, %p191
      %p193 = scmp.ne.s32.totalorder %s182, %s185
      %p194 = scmp.eq.s32.totalorder %s21, 1
      %p195 = por %p193, %p194
      %p196 = scmp.ne.s32.totalorder %s185, %s186
      %p197 = scmp.eq.s32.totalorder %s21, 0
      %p198 = por %p196, %p197
      %p199 = scmp.ne.s32.totalorder %s185, %s186
      %p200 = scmp.eq.s32.totalorder %s22, 1
      %p201 = por %p199, %p200
      %p203 = scmp.ne.s32.totalorder %s186, %s202
      %p204 = scmp.eq.s32.totalorder %s22, 0
      %p205 = por %p203, %p204
      %p206 = scmp.le.s32.totalorder 1, %s16
      %p207 = scmp.lt.s32.totalorder %s16, 3
      %p208 = pnand %p206, %p207
      %p209 = pneg %p208
      // Predicated region
      $region9: #{_forward_batched.1} parent=5 // pred_check
        _
      $region10: #{_forward_batched.1} parent=5 // pred_check_branch
        %211 = sbr.rel (%p208) target = $region12
      $region11: #{_forward_batched.1} parent=5 // pred_region
        %s212 = ssub.s32 %s16, 1
      $region12: #{_forward_batched.1} parent=5 // pred_fallthru
        _
      %p213 = scmp.lt.s32.totalorder %s16, 2
      // Predicated region
      $region13: #{_forward_batched.1} parent=5 // pred_check
        %p214 = pneg %p213
      $region14: #{_forward_batched.1} parent=5 // pred_check_branch
        %216 = sbr.rel (%p214) target = $region16
      $region15: #{_forward_batched.1} parent=5 // pred_region
        // Predicated region
        $region17: #{_forward_batched.1} parent=15 // pred_check
          %p217 = pneg %p36
        $region18: #{_forward_batched.1} parent=15 // pred_check_branch
          %219 = sbr.rel (%p217) target = $region20
        $region19: #{_forward_batched.1} parent=15 // pred_region
          %p220 = scmp.lt.s32.totalorder %s16, 1
          %s221 = scalar_select %p220, %s16, 1
          %s222 = smul.addr %s221, 2
          %s223 = smul.addr %s222, 8
          %s224 = scalar_lea.vmem %s0, %s223
        $region20: #{_forward_batched.1} parent=15 // pred_fallthru
          _
        // Predicated region
        $region21: #{_forward_batched.1} parent=15 // pred_check
          %p225 = pneg %p62
        $region22: #{_forward_batched.1} parent=15 // pred_check_branch
          %227 = sbr.rel (%p225) target = $region24
        $region23: #{_forward_batched.1} parent=15 // pred_region
          %p228 = scmp.lt.s32.totalorder %s16, 1
          %s229 = scalar_select %p228, %s16, 1
          %s230 = smul.addr %s229, 3
          %s231 = smul.addr %s230, 8
          %s232 = scalar_lea.vmem %s1, %s231
        $region24: #{_forward_batched.1} parent=15 // pred_fallthru
          _
        // Predicated region
        $region25: #{_forward_batched.1} parent=15 // pred_check
          %p233 = pneg %p88
        $region26: #{_forward_batched.1} parent=15 // pred_check_branch
          %235 = sbr.rel (%p233) target = $region28
        $region27: #{_forward_batched.1} parent=15 // pred_region
          %p236 = scmp.lt.s32.totalorder %s16, 1
          %s237 = scalar_select %p236, %s16, 1
          %s238 = smul.addr %s237, 3
          %s239 = smul.addr %s238, 8
          %s240 = scalar_lea.vmem %s2, %s239
        $region28: #{_forward_batched.1} parent=15 // pred_fallthru
          _
      $region16: #{_forward_batched.1} parent=5 // pred_fallthru
        _
      %p241 = scmp.le.s32.totalorder 1, %s16
      %p242 = scmp.lt.s32.totalorder %s16, 3
      %p243 = pnand %p241, %p242
      %p244 = pneg %p243
      // Predicated region
      $region29: #{_forward_batched.1} parent=5 // pred_check
        _
      $region30: #{_forward_batched.1} parent=5 // pred_check_branch
        %246 = sbr.rel (%p243) target = $region32
      $region31: #{_forward_batched.1} parent=5 // pred_region
        %s247 = ssub.s32 %s16, 1
        %p248 = scmp.lt.s32.totalorder %s21, 1
        %s249 = scalar_select %p248, %s21, 1
        %s250 = smul.addr %s249, 2
        %s251 = smul.addr %s250, 8
        %s252 = scalar_lea.vmem %s0, %s251
        %p253 = pneg %p42
        %p254 = pneg %p39
        %p255 = scmp.lt.s32.totalorder %s21, 1
        %s256 = scalar_select %p255, %s21, 1
        %s257 = smul.addr %s256, 3
        %s258 = smul.addr %s257, 8
        %s259 = scalar_lea.vmem %s1, %s258
        %p260 = pneg %p68
        %p261 = pneg %p65
        %p262 = scmp.lt.s32.totalorder %s21, 1
        %s263 = scalar_select %p262, %s21, 1
        %s264 = smul.addr %s263, 3
        %s265 = smul.addr %s264, 8
        %s266 = scalar_lea.vmem %s2, %s265
        %p267 = pneg %p94
        %p268 = pneg %p91
        %p269 = pneg %p120
        %p270 = pneg %p117
        %s271 = sand.u32 %s107, 1
        %s272 = scalar_lea.sflag [#allocation3], %s271
        %s273 = sand.u32 %s107, 1
        %s274 = smul.addr %s273, 16
        %s275 = scalar_lea.vmem [#allocation2], %s274
        %p276 = pneg %p146
        %p277 = pneg %p143
        %p278 = scmp.lt.s32.totalorder %s21, 1
        %s279 = scalar_select %p278, %s21, 1
        %s280 = smul.addr %s279, 3
        %s281 = smul.addr %s280, 8
        %s282 = scalar_lea.vmem %s4, %s281
        %p283 = pneg %p172
        %p284 = pneg %p169
        %p285 = scmp.lt.s32.totalorder %s21, 1
        %s286 = scalar_select %p285, %s21, 1
        %s287 = smul.addr %s286, 2
        %s288 = smul.addr %s287, 8
        %s289 = scalar_lea.vmem %s5, %s288
        %p290 = pneg %p198
        %p291 = pneg %p195
        %p292 = scmp.lt.s32.totalorder %s21, 1
        %s293 = scalar_select %p292, %s21, 1
        %s294 = smul.addr %s293, 3
        %s295 = smul.addr %s294, 8
        %s296 = scalar_lea.vmem %s6, %s295
        %p297 = scmp.lt.s32.totalorder %s21, 1
        %s298 = scalar_select %p297, %s21, 1
        %s299 = smul.addr %s298, 2
        %s300 = smul.addr %s299, 8
        %s301 = scalar_lea.vmem %s0, %s300
        %p302 = scmp.lt.s32.totalorder %s21, 1
        %s303 = scalar_select %p302, %s21, 1
        %s304 = smul.addr %s303, 3
        %s305 = smul.addr %s304, 8
        %s306 = scalar_lea.vmem %s1, %s305
        %p307 = scmp.lt.s32.totalorder %s21, 1
        %s308 = scalar_select %p307, %s21, 1
        %s309 = smul.addr %s308, 3
        %s310 = smul.addr %s309, 8
        %s311 = scalar_lea.vmem %s2, %s310
        %p312 = scmp.lt.s32.totalorder %s21, 1
        %s313 = scalar_select %p312, %s21, 1
        %s314 = smul.addr %s313, 3
        %s315 = smul.addr %s314, 8
        %s316 = scalar_lea.vmem %s4, %s315
        %p317 = scmp.lt.s32.totalorder %s21, 1
        %s318 = scalar_select %p317, %s21, 1
        %s319 = smul.addr %s318, 2
        %s320 = smul.addr %s319, 8
        %s321 = scalar_lea.vmem %s5, %s320
        %p322 = scmp.lt.s32.totalorder %s21, 1
        %s323 = scalar_select %p322, %s21, 1
        %s324 = smul.addr %s323, 3
        %s325 = smul.addr %s324, 8
        %s326 = scalar_lea.vmem %s6, %s325
        %v327 = vld [vmem:[%s301] sm:$0xff]
        %v328 = vld [vmem:[%s301 + $0x8] sm:$0xff]
        %v329 = vlaneseq
        %v330 = vand.u32 %v329, 127
        %vm331 = vcmp.eq.s32.totalorder %v330, 31
        %v332 = vsel %vm331, -1e+30, %v327
        %v333 = vsel %vm331, -1e+30, %v328
        %vm334 = vcmask 261120
        %v335 = vsel %vm334, %v332, -inf
        %336 = vmax.xlane.f32.xlu0 %v335
        %v337 = vpop.xlane.xlu0 %336
        %v338 = vsel %vm334, %v333, -inf
        %339 = vmax.xlane.f32.xlu0 %v338
        %v340 = vpop.xlane.xlu0 %339
        %v341 = vmax.f32 %v337, %v327
        %v342 = vmax.f32 %v340, %v328
        %344 = vset.pattern.permute.xlu0 31
        %345 = vperm.xlu0 %344, %v341
        %v346 = vpop.permute.xlu0 %345
        %349 = vset.pattern.permute.xlu0 31
        %350 = vperm.xlu0 %349, %v342
        %v351 = vpop.permute.xlu0 %350
        %v353 = vsub.f32 %v327, %v346
        %v354 = vsub.f32 %v328, %v351
        %v355 = vmul.f32 %v353, 1.442695
        %v356 = vpow.pop %v355
        %v357 = vmul.f32 %v354, 1.442695
        %v358 = vpow.pop %v357
        %v359 = vsel %vm334, %v356, 0.0
        %360 = vadd.xlane.f32.xlu0 %v359
        %v361 = vpop.xlane.xlu0 %360
        %v362 = vsel %vm334, %v358, 0.0
        %363 = vadd.xlane.f32.xlu0 %v362
        %v364 = vpop.xlane.xlu0 %363
        %v365 = vrcp.pop %v361
        %v366 = vrcp.pop %v364
        %v367 = vmul.f32 %v356, %v365
        %v368 = vmul.f32 %v358, %v366
        %v369 = vsel %vm331, 0.0, %v367
        %v370 = vsel %vm331, 0.0, %v368
        %371 = vst.msk [vmem:[%s275] sm:$0xff] %vm334, %v369
        %372 = vst.msk [vmem:[%s275 + $0x8] sm:$0xff] %vm334, %v370
        %v373 = vsub.f32 %v337, %v341
        %v374 = vsub.f32 %v340, %v342
        %v375 = vmul.f32 %v373, 1.442695
        %v376 = vpow.pop %v375
        %v377 = vmul.f32 %v374, 1.442695
        %v378 = vpow.pop %v377
        %v379 = vmul.f32 %v376, %v365
        %v380 = vmul.f32 %v378, %v366
        %vm381 = vcmp.eq.f32.partialorder %v332, %v337
        %vm382 = vcmp.eq.f32.partialorder %v333, %v340
        %v383 = vsel %vm381, %v330, 32
        %v384 = vsel %vm382, %v330, 32
        %v385 = vsel %vm334, %v383, 2147483647
        %v386 = vand.u32 %v385, 65535
        %v387 = vshra.s32 %v385, 16
        %v388 = vcvt.s32.f32 %v386
        %v389 = vcvt.s32.f32 %v387
        %390 = vmin.xlane.f32.xlu0 %v389
        %v391 = vpop.xlane.xlu0 %390
        %vm392 = vcmp.eq.f32.partialorder %v389, %v391
        %v393 = vsel %vm392, %v388, inf
        %394 = vmin.xlane.f32.xlu0 %v393
        %v395 = vpop.xlane.xlu0 %394
        %v396 = vcvt.f32.s32 %v395
        %v397 = vcvt.f32.s32 %v391
        %v398 = vshll.u32 %v397, 16
        %v399 = vadd.s32 %v398, %v396
        %v400 = vsel %vm334, %v384, 2147483647
        %v401 = vand.u32 %v400, 65535
        %v402 = vshra.s32 %v400, 16
        %v403 = vcvt.s32.f32 %v401
        %v404 = vcvt.s32.f32 %v402
        %405 = vmin.xlane.f32.xlu0 %v404
        %v406 = vpop.xlane.xlu0 %405
        %vm407 = vcmp.eq.f32.partialorder %v404, %v406
        %v408 = vsel %vm407, %v403, inf
        %409 = vmin.xlane.f32.xlu0 %v408
        %v410 = vpop.xlane.xlu0 %409
        %v411 = vcvt.f32.s32 %v410
        %v412 = vcvt.f32.s32 %v406
        %v413 = vshll.u32 %v412, 16
        %v414 = vadd.s32 %v413, %v411
        %vm415 = vcmp.eq.s32.totalorder %v330, 0
        %v416 = vcvt.s32.f32 %v399
        %v417 = vcvt.s32.f32 %v414
        %419 = vset.pattern.permute.xlu0 31
        %420 = vperm.xlu0 %419, %v379
        %v421 = vpop.permute.xlu0 %420
        %424 = vset.pattern.permute.xlu0 31
        %425 = vperm.xlu0 %424, %v380
        %v426 = vpop.permute.xlu0 %425
        %v428 = vsel %vm415, %v421, %v416
        %v429 = vsel %vm415, %v426, %v417
        %vm430 = vcmask 15360
        %431 = vst.msk [vmem:[%s321] sm:$0xff] %vm430, %v428
        %432 = vst.msk [vmem:[%s321 + $0x8] sm:$0xff] %vm430, %v429
        %v433 = vld [vmem:[%s306] sm:$0xff]
        %v434 = vld [vmem:[%s306 + $0x8] sm:$0xff]
        %v435 = vld [vmem:[%s306 + $0x10] sm:$0xff]
        %vm436 = vcmp.eq.s32.totalorder %v330, 15
        %v437 = vsel %vm436, -1e+30, %v433
        %v438 = vsel %vm436, -1e+30, %v434
        %v439 = vsel %vm436, -1e+30, %v435
        %vm440 = vcmask 130048
        %v441 = vsel %vm440, %v437, -inf
        %442 = vmax.xlane.f32.xlu0 %v441
        %v443 = vpop.xlane.xlu0 %442
        %v444 = vsel %vm440, %v438, -inf
        %445 = vmax.xlane.f32.xlu0 %v444
        %v446 = vpop.xlane.xlu0 %445
        %v447 = vsel %vm440, %v439, -inf
        %448 = vmax.xlane.f32.xlu0 %v447
        %v449 = vpop.xlane.xlu0 %448
        %v450 = vmax.f32 %v443, %v433
        %v451 = vmax.f32 %v446, %v434
        %v452 = vmax.f32 %v449, %v435
        %454 = vset.pattern.permute.xlu0 15
        %455 = vperm.xlu0 %454, %v450
        %v456 = vpop.permute.xlu0 %455
        %459 = vset.pattern.permute.xlu0 15
        %460 = vperm.xlu0 %459, %v451
        %v461 = vpop.permute.xlu0 %460
        %464 = vset.pattern.permute.xlu0 15
        %465 = vperm.xlu0 %464, %v452
        %v466 = vpop.permute.xlu0 %465
        %v468 = vsub.f32 %v433, %v456
        %v469 = vsub.f32 %v434, %v461
        %v470 = vsub.f32 %v435, %v466
        %v471 = vmul.f32 %v468, 1.442695
        %v472 = vpow.pop %v471
        %v473 = vmul.f32 %v469, 1.442695
        %v474 = vpow.pop %v473
        %v475 = vmul.f32 %v470, 1.442695
        %v476 = vpow.pop %v475
        %v477 = vsel %vm440, %v472, 0.0
        %478 = vadd.xlane.f32.xlu0 %v477
        %v479 = vpop.xlane.xlu0 %478
        %v480 = vsel %vm440, %v474, 0.0
        %481 = vadd.xlane.f32.xlu0 %v480
        %v482 = vpop.xlane.xlu0 %481
        %v483 = vsel %vm440, %v476, 0.0
        %484 = vadd.xlane.f32.xlu0 %v483
        %v485 = vpop.xlane.xlu0 %484
        %v486 = vrcp.pop %v479
        %v487 = vrcp.pop %v482
        %v488 = vrcp.pop %v485
        %v489 = vmul.f32 %v472, %v486
        %v490 = vmul.f32 %v474, %v487
        %v491 = vmul.f32 %v476, %v488
        %492 = vst.msk [vmem:[%s316] sm:$0xff] %vm440, %v489
        %493 = vst.msk [vmem:[%s316 + $0x8] sm:$0xff] %vm440, %v490
        %494 = vst.msk [vmem:[%s316 + $0x10] sm:$0xff] %vm440, %v491
        %v495 = vsub.f32 %v443, %v450
        %v496 = vsub.f32 %v446, %v451
        %v497 = vsub.f32 %v449, %v452
        %v498 = vmul.f32 %v495, 1.442695
        %v499 = vpow.pop %v498
        %v500 = vmul.f32 %v496, 1.442695
        %v501 = vpow.pop %v500
        %v502 = vmul.f32 %v497, 1.442695
        %v503 = vpow.pop %v502
        %v504 = vmul.f32 %v499, %v486
        %v505 = vmul.f32 %v501, %v487
        %v506 = vmul.f32 %v503, %v488
        %vm507 = vcmp.eq.f32.partialorder %v437, %v443
        %vm508 = vcmp.eq.f32.partialorder %v438, %v446
        %vm509 = vcmp.eq.f32.partialorder %v439, %v449
        %v510 = vsel %vm507, %v330, 16
        %v511 = vsel %vm508, %v330, 16
        %v512 = vsel %vm509, %v330, 16
        %v513 = vsel %vm440, %v510, 2147483647
        %v514 = vand.u32 %v513, 65535
        %v515 = vshra.s32 %v513, 16
        %v516 = vcvt.s32.f32 %v514
        %v517 = vcvt.s32.f32 %v515
        %518 = vmin.xlane.f32.xlu0 %v517
        %v519 = vpop.xlane.xlu0 %518
        %vm520 = vcmp.eq.f32.partialorder %v517, %v519
        %v521 = vsel %vm520, %v516, inf
        %522 = vmin.xlane.f32.xlu0 %v521
        %v523 = vpop.xlane.xlu0 %522
        %v524 = vcvt.f32.s32 %v523
        %v525 = vcvt.f32.s32 %v519
        %v526 = vshll.u32 %v525, 16
        %v527 = vadd.s32 %v526, %v524
        %v528 = vsel %vm440, %v511, 2147483647
        %v529 = vand.u32 %v528, 65535
        %v530 = vshra.s32 %v528, 16
        %v531 = vcvt.s32.f32 %v529
        %v532 = vcvt.s32.f32 %v530
        %533 = vmin.xlane.f32.xlu0 %v532
        %v534 = vpop.xlane.xlu0 %533
        %vm535 = vcmp.eq.f32.partialorder %v532, %v534
        %v536 = vsel %vm535, %v531, inf
        %537 = vmin.xlane.f32.xlu0 %v536
        %v538 = vpop.xlane.xlu0 %537
        %v539 = vcvt.f32.s32 %v538
        %v540 = vcvt.f32.s32 %v534
        %v541 = vshll.u32 %v540, 16
        %v542 = vadd.s32 %v541, %v539
        %v543 = vsel %vm440, %v512, 2147483647
        %v544 = vand.u32 %v543, 65535
        %v545 = vshra.s32 %v543, 16
        %v546 = vcvt.s32.f32 %v544
        %v547 = vcvt.s32.f32 %v545
        %548 = vmin.xlane.f32.xlu0 %v547
        %v549 = vpop.xlane.xlu0 %548
        %vm550 = vcmp.eq.f32.partialorder %v547, %v549
        %v551 = vsel %vm550, %v546, inf
        %552 = vmin.xlane.f32.xlu0 %v551
        %v553 = vpop.xlane.xlu0 %552
        %v554 = vcvt.f32.s32 %v553
        %v555 = vcvt.f32.s32 %v549
        %v556 = vshll.u32 %v555, 16
        %v557 = vadd.s32 %v556, %v554
        %v558 = vld [vmem:[%s311] sm:$0xff]
        %v559 = vld [vmem:[%s311 + $0x8] sm:$0xff]
        %v560 = vld [vmem:[%s311 + $0x10] sm:$0xff]
        %561 = vset.pattern.permute.xlu0 0
        %562 = vperm.xlu0 %561, %v558
        %v563 = vpop.permute.xlu0 %562
        %564 = vset.pattern.permute.xlu0 0
        %565 = vperm.xlu0 %564, %v559
        %v566 = vpop.permute.xlu0 %565
        %567 = vset.pattern.permute.xlu0 0
        %568 = vperm.xlu0 %567, %v560
        %v569 = vpop.permute.xlu0 %568
        %vm570 = vcmp.eq.s32.totalorder %v330, %v563
        %vm571 = vcmp.eq.s32.totalorder %v330, %v566
        %vm572 = vcmp.eq.s32.totalorder %v330, %v569
        %v573 = vsel %vm570, 1, 0
        %v574 = vsel %vm571, 1, 0
        %v575 = vsel %vm572, 1, 0
        %v576 = vcvt.s32.f32 %v573
        %v577 = vcvt.s32.f32 %v574
        %v578 = vcvt.s32.f32 %v575
        %579 = vset.pattern.permute.xlu0 1
        %580 = vperm.xlu0 %579, %v558
        %v581 = vpop.permute.xlu0 %580
        %582 = vset.pattern.permute.xlu0 1
        %583 = vperm.xlu0 %582, %v559
        %v584 = vpop.permute.xlu0 %583
        %585 = vset.pattern.permute.xlu0 1
        %586 = vperm.xlu0 %585, %v560
        %v587 = vpop.permute.xlu0 %586
        %vm588 = vcmp.eq.s32.totalorder %v330, %v581
        %vm589 = vcmp.eq.s32.totalorder %v330, %v584
        %vm590 = vcmp.eq.s32.totalorder %v330, %v587
        %v591 = vsel %vm588, 1, 0
        %v592 = vsel %vm589, 1, 0
        %v593 = vsel %vm590, 1, 0
        %v594 = vcvt.s32.f32 %v591
        %v595 = vcvt.s32.f32 %v592
        %v596 = vcvt.s32.f32 %v593
        %597 = vrot.lane.b32.xlu0 %v379, 97
        %v598 = vpop.permute.xlu0 %597
        %599 = vrot.lane.b32.xlu0 %v380, 97
        %v600 = vpop.permute.xlu0 %599
        %v604 = vsel %vm440, %v576, 0
        %v607 = vsel %vm440, %v577, 0
        %v610 = vsel %vm440, %v578, 0
        %612 = vmatprep.subr.mxu0 0.0
        %613 = vmatpush1.msra.mxu0 %v598
        %614 = vmatprep.subr.mxu0 0.0
        %615 = vmatpush1.msra.mxu0 %v600
        %616 = vmatprep.subr.mxu0 0.0
        %617 = vmatpush1.msra.mxu0 0.0
        %618 = vmatprep.subr.mxu0 0.0
        %619 = vmatpush1.msra.mxu0 0.0
        %620 = vmatprep.subr.mxu0 0.0
        %621 = vmatpush1.msra.mxu0 0.0
        %622 = vmatprep.subr.mxu0 0.0
        %623 = vmatpush1.msra.mxu0 0.0
        %624 = vmatprep.subr.mxu0 0.0
        %625 = vmatpush1.msra.mxu0 0.0
        %626 = vmatprep.subr.mxu0 0.0
        %627 = vmatpush1.msra.mxu0 0.0
        %628 = vmatprep.subr.mxu0 0.0
        %629 = vmatpush1.msra.mxu0 0.0
        %630 = vmatprep.subr.mxu0 0.0
        %631 = vmatpush1.msra.mxu0 0.0
        %632 = vmatprep.subr.mxu0 0.0
        %633 = vmatpush1.msra.mxu0 0.0
        %634 = vmatprep.subr.mxu0 0.0
        %635 = vmatpush1.msra.mxu0 0.0
        %636 = vmatprep.subr.mxu0 0.0
        %637 = vmatpush1.msra.mxu0 0.0
        %638 = vmatprep.subr.mxu0 0.0
        %639 = vmatpush1.msra.mxu0 0.0
        %640 = vmatprep.subr.mxu0 0.0
        %641 = vmatpush1.msra.mxu0 0.0
        %642 = vmatprep.subr.mxu0 0.0
        %643 = vmatpush1.msra.mxu0 0.0
        %644 = vmatprep.subr.mxu0 0.0
        %645 = vmatpush1.msra.mxu0 0.0
        %646 = vmatprep.subr.mxu0 0.0
        %647 = vmatpush1.msra.mxu0 0.0
        %648 = vmatprep.subr.mxu0 0.0
        %649 = vmatpush1.msra.mxu0 0.0
        %650 = vmatprep.subr.mxu0 0.0
        %651 = vmatpush1.msra.mxu0 0.0
        %652 = vmatprep.subr.mxu0 0.0
        %653 = vmatpush1.msra.mxu0 0.0
        %654 = vmatprep.subr.mxu0 0.0
        %655 = vmatpush1.msra.mxu0 0.0
        %656 = vmatprep.subr.mxu0 0.0
        %657 = vmatpush1.msra.mxu0 0.0
        %658 = vmatprep.subr.mxu0 0.0
        %659 = vmatpush1.msra.mxu0 0.0
        %660 = vmatprep.subr.mxu0 0.0
        %661 = vmatpush1.msra.mxu0 0.0
        %662 = vmatprep.subr.mxu0 0.0
        %663 = vmatpush1.msra.mxu0 0.0
        %664 = vmatprep.subr.mxu0 0.0
        %665 = vmatpush1.msra.mxu0 0.0
        %666 = vmatprep.subr.mxu0 0.0
        %667 = vmatpush1.msra.mxu0 0.0
        %668 = vmatprep.subr.mxu0 0.0
        %669 = vmatpush1.msra.mxu0 0.0
        %670 = vmatprep.subr.mxu0 0.0
        %671 = vmatpush1.msra.mxu0 0.0
        %672 = vmatprep.subr.mxu0 0.0
        %673 = vmatpush1.msra.mxu0 0.0
        %674 = vmatprep.subr.mxu0 0.0
        %675 = vmatpush1.msra.mxu0 0.0
        %676 = vmatprep.mubr.f32.mxu0 0.0
        %677 = vmatmul.mubr.f32.gmra.mrb[0].mxu0 %v604
        %v678 = vpop.f32.mrb[0].mxu0
        %v679 = vadd.f32 0.0, %v678
        %v680 = vpop.f32.mrb[0].mxu0
        %681 = vmatprep.mubr.f32.mxu0 0.0
        %682 = vmatmul.mubr.f32.gmra.mrb[0].mxu0 %v607
        %v683 = vpop.f32.mrb[0].mxu0
        %v684 = vadd.f32 0.0, %v683
        %v685 = vpop.f32.mrb[0].mxu0
        %686 = vmatprep.mubr.f32.mxu0 0.0
        %687 = vmatmul.mubr.f32.gmra.mrb[0].mxu0 %v610
        %v688 = vpop.f32.mrb[0].mxu0
        %v689 = vadd.f32 0.0, %v688
        %v690 = vpop.f32.mrb[0].mxu0
        %691 = vdwg.mxu0
        %v693 = vsel %vm440, %v594, 0
        %v696 = vsel %vm440, %v595, 0
        %v699 = vsel %vm440, %v596, 0
        %701 = vmatprep.subr.mxu0 0.0
        %702 = vmatpush1.msra.mxu0 %v598
        %703 = vmatprep.subr.mxu0 0.0
        %704 = vmatpush1.msra.mxu0 %v600
        %705 = vmatprep.subr.mxu0 0.0
        %706 = vmatpush1.msra.mxu0 0.0
        %707 = vmatprep.subr.mxu0 0.0
        %708 = vmatpush1.msra.mxu0 0.0
        %709 = vmatprep.subr.mxu0 0.0
        %710 = vmatpush1.msra.mxu0 0.0
        %711 = vmatprep.subr.mxu0 0.0
        %712 = vmatpush1.msra.mxu0 0.0
        %713 = vmatprep.subr.mxu0 0.0
        %714 = vmatpush1.msra.mxu0 0.0
        %715 = vmatprep.subr.mxu0 0.0
        %716 = vmatpush1.msra.mxu0 0.0
        %717 = vmatprep.subr.mxu0 0.0
        %718 = vmatpush1.msra.mxu0 0.0
        %719 = vmatprep.subr.mxu0 0.0
        %720 = vmatpush1.msra.mxu0 0.0
        %721 = vmatprep.subr.mxu0 0.0
        %722 = vmatpush1.msra.mxu0 0.0
        %723 = vmatprep.subr.mxu0 0.0
        %724 = vmatpush1.msra.mxu0 0.0
        %725 = vmatprep.subr.mxu0 0.0
        %726 = vmatpush1.msra.mxu0 0.0
        %727 = vmatprep.subr.mxu0 0.0
        %728 = vmatpush1.msra.mxu0 0.0
        %729 = vmatprep.subr.mxu0 0.0
        %730 = vmatpush1.msra.mxu0 0.0
        %731 = vmatprep.subr.mxu0 0.0
        %732 = vmatpush1.msra.mxu0 0.0
        %733 = vmatprep.subr.mxu0 0.0
        %734 = vmatpush1.msra.mxu0 0.0
        %735 = vmatprep.subr.mxu0 0.0
        %736 = vmatpush1.msra.mxu0 0.0
        %737 = vmatprep.subr.mxu0 0.0
        %738 = vmatpush1.msra.mxu0 0.0
        %739 = vmatprep.subr.mxu0 0.0
        %740 = vmatpush1.msra.mxu0 0.0
        %741 = vmatprep.subr.mxu0 0.0
        %742 = vmatpush1.msra.mxu0 0.0
        %743 = vmatprep.subr.mxu0 0.0
        %744 = vmatpush1.msra.mxu0 0.0
        %745 = vmatprep.subr.mxu0 0.0
        %746 = vmatpush1.msra.mxu0 0.0
        %747 = vmatprep.subr.mxu0 0.0
        %748 = vmatpush1.msra.mxu0 0.0
        %749 = vmatprep.subr.mxu0 0.0
        %750 = vmatpush1.msra.mxu0 0.0
        %751 = vmatprep.subr.mxu0 0.0
        %752 = vmatpush1.msra.mxu0 0.0
        %753 = vmatprep.subr.mxu0 0.0
        %754 = vmatpush1.msra.mxu0 0.0
        %755 = vmatprep.subr.mxu0 0.0
        %756 = vmatpush1.msra.mxu0 0.0
        %757 = vmatprep.subr.mxu0 0.0
        %758 = vmatpush1.msra.mxu0 0.0
        %759 = vmatprep.subr.mxu0 0.0
        %760 = vmatpush1.msra.mxu0 0.0
        %761 = vmatprep.subr.mxu0 0.0
        %762 = vmatpush1.msra.mxu0 0.0
        %763 = vmatprep.subr.mxu0 0.0
        %764 = vmatpush1.msra.mxu0 0.0
        %765 = vmatprep.mubr.f32.mxu0 0.0
        %766 = vmatmul.mubr.f32.gmra.mrb[0].mxu0 %v693
        %v767 = vpop.f32.mrb[0].mxu0
        %v768 = vadd.f32 0.0, %v767
        %v769 = vpop.f32.mrb[0].mxu0
        %770 = vmatprep.mubr.f32.mxu0 0.0
        %771 = vmatmul.mubr.f32.gmra.mrb[0].mxu0 %v696
        %v772 = vpop.f32.mrb[0].mxu0
        %v773 = vadd.f32 0.0, %v772
        %v774 = vpop.f32.mrb[0].mxu0
        %775 = vmatprep.mubr.f32.mxu0 0.0
        %776 = vmatmul.mubr.f32.gmra.mrb[0].mxu0 %v699
        %v777 = vpop.f32.mrb[0].mxu0
        %v778 = vadd.f32 0.0, %v777
        %v779 = vpop.f32.mrb[0].mxu0
        %780 = vdwg.mxu0
        %784 = vrot.lane.b32.xlu0 %v679, 15
        %v785 = vpop.permute.xlu0 %784
        %786 = vrot.lane.b32.xlu0 %v684, 15
        %v787 = vpop.permute.xlu0 %786
        %788 = vrot.lane.b32.xlu0 %v689, 15
        %v789 = vpop.permute.xlu0 %788
        %v793 = vmul.f32 %v504, %v785
        %v794 = vmul.f32 %v505, %v787
        %v795 = vmul.f32 %v506, %v789
        %799 = vrot.lane.b32.xlu0 %v768, 15
        %v800 = vpop.permute.xlu0 %799
        %801 = vrot.lane.b32.xlu0 %v773, 15
        %v802 = vpop.permute.xlu0 %801
        %803 = vrot.lane.b32.xlu0 %v778, 15
        %v804 = vpop.permute.xlu0 %803
        %v808 = vmul.f32 %v793, %v800
        %v809 = vmul.f32 %v794, %v802
        %v810 = vmul.f32 %v795, %v804
        %v811 = vcvt.s32.f32 %v527
        %v812 = vcvt.s32.f32 %v542
        %v813 = vcvt.s32.f32 %v557
        %815 = vset.pattern.permute.xlu0 15
        %816 = vperm.xlu0 %815, %v808
        %v817 = vpop.permute.xlu0 %816
        %820 = vset.pattern.permute.xlu0 15
        %821 = vperm.xlu0 %820, %v809
        %v822 = vpop.permute.xlu0 %821
        %825 = vset.pattern.permute.xlu0 15
        %826 = vperm.xlu0 %825, %v810
        %v827 = vpop.permute.xlu0 %826
        %v829 = vsel %vm415, %v817, %v811
        %v830 = vsel %vm415, %v822, %v812
        %v831 = vsel %vm415, %v827, %v813
        %832 = vst.msk [vmem:[%s326] sm:$0xff] %vm430, %v829
        %833 = vst.msk [vmem:[%s326 + $0x8] sm:$0xff] %vm430, %v830
        %834 = vst.msk [vmem:[%s326 + $0x10] sm:$0xff] %vm430, %v831
        %s835 = sand.u32 %s107, 1
        %s836 = scalar_lea.sflag [#allocation3], %s835
        %s837 = sand.u32 %s107, 1
        %s838 = smul.addr %s837, 16
        %s839 = scalar_lea.vmem [#allocation2], %s838
        %p840 = scmp.lt.s32.totalorder %s21, 1
        %s841 = scalar_select %p840, %s21, 1
        %s842 = smul.addr %s841, 3
        %s843 = smul.addr %s842, 8
        %s844 = scalar_lea.vmem %s4, %s843
        %p845 = scmp.lt.s32.totalorder %s21, 1
        %s846 = scalar_select %p845, %s21, 1
        %s847 = smul.addr %s846, 2
        %s848 = smul.addr %s847, 8
        %s849 = scalar_lea.vmem %s5, %s848
        %p850 = scmp.lt.s32.totalorder %s21, 1
        %s851 = scalar_select %p850, %s21, 1
        %s852 = smul.addr %s851, 3
        %s853 = smul.addr %s852, 8
        %s854 = scalar_lea.vmem %s6, %s853
        // Predicated region
        $region33: #{_forward_batched.1} parent=31 // pred_check
          %p855 = pneg %p117
        $region34: #{_forward_batched.1} parent=31 // pred_check_branch
          %857 = sbr.rel (%p855) target = $region36
        $region35: #{_forward_batched.1} parent=31 // pred_region
          %s859 = ssub.s32 256, 256
          %860 = vsyncadd %s836, %s859
          %s861 = smul.addr %s21, 2
          %s862 = smul.addr %s861, 128
          %s863 = scalar_lea.hbm %s3, %s862
          %s864 = sshll.u32 %s839, 4
          %s865 = int_to_ptr.vmem [resolvable:$true] %s864
          %870 = dma.vmem_to_hbm [thread:$0]  %s865, 256, %s863, %s836, 128, 128, 8
        $region36: #{_forward_batched.1} parent=31 // pred_fallthru
          _
        // Predicated region
        $region37: #{_forward_batched.1} parent=31 // pred_check
          %p871 = pneg %p143
        $region38: #{_forward_batched.1} parent=31 // pred_check_branch
          %873 = sbr.rel (%p871) target = $region40
        $region39: #{_forward_batched.1} parent=31 // pred_region
          _
        $region40: #{_forward_batched.1} parent=31 // pred_fallthru
          _
        // Predicated region
        $region41: #{_forward_batched.1} parent=31 // pred_check
          %p874 = pneg %p169
        $region42: #{_forward_batched.1} parent=31 // pred_check_branch
          %876 = sbr.rel (%p874) target = $region44
        $region43: #{_forward_batched.1} parent=31 // pred_region
          _
        $region44: #{_forward_batched.1} parent=31 // pred_fallthru
          _
        // Predicated region
        $region45: #{_forward_batched.1} parent=31 // pred_check
          %p877 = pneg %p195
        $region46: #{_forward_batched.1} parent=31 // pred_check_branch
          %879 = sbr.rel (%p877) target = $region48
        $region47: #{_forward_batched.1} parent=31 // pred_region
          _
        $region48: #{_forward_batched.1} parent=31 // pred_fallthru
          _
      $region32: #{_forward_batched.1} parent=5 // pred_fallthru
        _
      %p880 = scmp.le.s32.totalorder 2, %s16
      // Predicated region
      $region49: #{_forward_batched.1} parent=5 // pred_check
        %p881 = pneg %p880
      $region50: #{_forward_batched.1} parent=5 // pred_check_branch
        %883 = sbr.rel (%p881) target = $region52
      $region51: #{_forward_batched.1} parent=5 // pred_region
        %s884 = ssub.s32 %s16, 2
        // Predicated region
        $region53: #{_forward_batched.1} parent=51 // pred_check
          %p885 = pneg %p123
        $region54: #{_forward_batched.1} parent=51 // pred_check_branch
          %887 = sbr.rel (%p885) target = $region56
        $region55: #{_forward_batched.1} parent=51 // pred_region
          %s888 = sand.u32 %s108, 1
          %s889 = scalar_lea.sflag [#allocation3], %s888
          %s890 = sand.u32 %s108, 1
          %s891 = smul.addr %s890, 16
          %s892 = scalar_lea.vmem [#allocation2], %s891
          %893 = dma.done %s889, 256
        $region56: #{_forward_batched.1} parent=51 // pred_fallthru
          _
        // Predicated region
        $region57: #{_forward_batched.1} parent=51 // pred_check
          %p894 = pneg %p149
        $region58: #{_forward_batched.1} parent=51 // pred_check_branch
          %896 = sbr.rel (%p894) target = $region60
        $region59: #{_forward_batched.1} parent=51 // pred_region
          %p897 = scmp.lt.s32.totalorder %s22, 1
          %s898 = scalar_select %p897, %s22, 1
          %s899 = smul.addr %s898, 3
          %s900 = smul.addr %s899, 8
          %s901 = scalar_lea.vmem %s4, %s900
        $region60: #{_forward_batched.1} parent=51 // pred_fallthru
          _
        // Predicated region
        $region61: #{_forward_batched.1} parent=51 // pred_check
          %p902 = pneg %p175
        $region62: #{_forward_batched.1} parent=51 // pred_check_branch
          %904 = sbr.rel (%p902) target = $region64
        $region63: #{_forward_batched.1} parent=51 // pred_region
          %p905 = scmp.lt.s32.totalorder %s22, 1
          %s906 = scalar_select %p905, %s22, 1
          %s907 = smul.addr %s906, 2
          %s908 = smul.addr %s907, 8
          %s909 = scalar_lea.vmem %s5, %s908
        $region64: #{_forward_batched.1} parent=51 // pred_fallthru
          _
        // Predicated region
        $region65: #{_forward_batched.1} parent=51 // pred_check
          %p910 = pneg %p201
        $region66: #{_forward_batched.1} parent=51 // pred_check_branch
          %912 = sbr.rel (%p910) target = $region68
        $region67: #{_forward_batched.1} parent=51 // pred_region
          %p913 = scmp.lt.s32.totalorder %s22, 1
          %s914 = scalar_select %p913, %s22, 1
          %s915 = smul.addr %s914, 3
          %s916 = smul.addr %s915, 8
          %s917 = scalar_lea.vmem %s6, %s916
        $region68: #{_forward_batched.1} parent=51 // pred_fallthru
          _
      $region52: #{_forward_batched.1} parent=5 // pred_fallthru
        _
    $region6: #{_forward_batched.1} parent=1 // loop_footer
      %s20 = sadd.s32 1, %s16
    $region7: #{_forward_batched.1} parent=1 // loop_footer_branch
      %15 = sbr.rel target = $region3
    $region8: #{_forward_batched.1} parent=1 // loop_exit
      _
    %918 = vsyncpa [#allocation3], 1
    %s919 = scalar_lea.sflag [#allocation3], 1
    %920 = vsyncpa %s919, 1

</llo_original>
